<compile_context>
chip_gen: v6e
topology: v6e:2x2x1
jax: 0.10.0
libtpu: 0.0.40
codegen_flags: <defaults>
</compile_context>

<pallas_src>
import functools

import jax
import jax.numpy as jnp
from jax import lax
from jax.experimental import pallas as pl
from jax.experimental.pallas import tpu as pltpu


def _round_up(v, m):
    return (v + m - 1) // m * m


def pnn_kernel(x_ref, xsq_ref, txt_ref, ty_ref, tsq_ref, out_ref, acc_ref,
               *, neg_inv_two_sigma_sq, ones_col, compute_dtype):
    j = pl.program_id(1)  # N (train samples) reduction axis

    @pl.when(j == 0)
    def _init():
        acc_ref[...] = jnp.zeros_like(acc_ref)

    # Cross term on the MXU: (B_tile, N_tile) = x (B_tile, D_pad) @ txT
    # (D_pad, N_tile).  Operands are bf16 (or f32), accumulation is f32.
    cross = jnp.dot(x_ref[...], txt_ref[...],
                    preferred_element_type=jnp.float32)

    # ||x - t||^2 = ||x||^2 + ||t||^2 - 2 x.t ; norms are exact f32 and the
    # assembly stays in f32.  Padded train rows carry a huge ||t||^2, so their
    # weight underflows to exactly 0 and they contribute nothing.
    dist = xsq_ref[...] + tsq_ref[...] - 2.0 * cross      # (B_tile, N_tile) f32

    # exp in the compute dtype (bf16 on the fast path -> bf16 EUP on v6e/v7x,
    # and w feeds the bf16 matmul directly).
    w = jnp.exp((dist * neg_inv_two_sigma_sq).astype(compute_dtype))

    # Unnormalized prediction accumulate on the MXU.  ty carries a ones column
    # at `ones_col`, so acc[:, ones_col] is the running weight row-sum
    # (denominator) — no per-step XLU reduction needed.
    acc_ref[...] += jnp.dot(w, ty_ref[...], preferred_element_type=jnp.float32)

    @pl.when(j == pl.num_programs(1) - 1)
    def _finalize():
        acc = acc_ref[...]
        # Extract the denominator column (lane `ones_col`) with an iota mask +
        # lane reduce: one cheap XLU reduce per batch tile, at finalize only.
        col_ids = lax.broadcasted_iota(jnp.int32, acc.shape, 1)
        denom = jnp.sum(jnp.where(col_ids == ones_col, acc, 0.0),
                        axis=1, keepdims=True) + 1e-10     # epsilon exactly once
        out_ref[...] = (acc / denom).astype(out_ref.dtype)


def pnn_prepare(train_x, train_y, sigma, *, mxu_dtype=jnp.bfloat16, n_tile=512):
    """One-time preprocessing of the static "trained" state (train_model)."""
    f32 = jnp.float32
    train_x = jnp.asarray(train_x, f32)
    train_y = jnp.asarray(train_y, f32)
    N, D = train_x.shape
    C = train_y.shape[1]

    D_pad = _round_up(D, 128)
    # Output padded so there is at least one spare column to host the ones
    # column that yields the row-sum denominator from the same MXU matmul.
    C_pad = _round_up(C + 1, 128)
    N_tile = min(n_tile, _round_up(N, 128))
    N_pad = _round_up(N, N_tile)

    # Pre-transposed train_x: (D_pad, N_pad) so the in-kernel cross term is a
    # plain NN matmul (no per-step transpose on the hot path).
    txt = jnp.zeros((D_pad, N_pad), f32).at[:D, :N].set(train_x.T)
    txt = txt.astype(mxu_dtype)

    # train_y with a ones column at index C (valid rows only).
    ty = jnp.zeros((N_pad, C_pad), f32).at[:N, :C].set(train_y)
    ty = ty.at[:N, C].set(1.0).astype(mxu_dtype)

    # Exact f32 train-sample squared norms; padded rows get a huge norm so
    # their weight underflows to exactly 0.
    t_sq = jnp.sum(train_x * train_x, axis=1)
    t_sq = jnp.concatenate(
        [t_sq, jnp.full((N_pad - N,), 1e30, f32)]).reshape(1, N_pad)

    return dict(txt=txt, ty=ty, t_sq=t_sq,
                n_train=int(N), n_classes=int(C), input_dim=int(D),
                n_tile=int(N_tile), sigma=float(sigma), mxu_dtype=mxu_dtype)


def pnn_apply(params, x, *, b_tile=256):
    f32 = jnp.float32
    x = jnp.asarray(x, f32)
    B, D = x.shape
    assert D == params["input_dim"]

    mxu_dtype = params["mxu_dtype"]
    txt, ty, t_sq = params["txt"], params["ty"], params["t_sq"]
    D_pad, N_pad = txt.shape
    C_pad = ty.shape[1]
    N_tile = params["n_tile"]
    C = params["n_classes"]
    sigma = params["sigma"]

    # Batch tile: multiple of 8 sublanes, capped by the (padded) batch.
    B_tile = min(b_tile, _round_up(B, 8))
    B_pad = _round_up(B, B_tile)

    # Per-call query preprocessing (small): pad + cast, plus exact f32 norms
    # hoisted out of the N loop.
    x_p = jnp.zeros((B_pad, D_pad), f32).at[:B, :D].set(x).astype(mxu_dtype)
    x_sq = jnp.zeros((B_pad, 1), f32).at[:B, 0].set(jnp.sum(x * x, axis=1))

    grid = (B_pad // B_tile, N_pad // N_tile)
    neg_inv_two_sigma_sq = -1.0 / (2.0 * sigma * sigma)
    compute_dtype = mxu_dtype

    kernel = functools.partial(pnn_kernel,
                               neg_inv_two_sigma_sq=neg_inv_two_sigma_sq,
                               ones_col=C,
                               compute_dtype=compute_dtype)

    item = jnp.dtype(mxu_dtype).itemsize
    n_btiles = B_pad // B_tile
    cost = pl.CostEstimate(
        flops=2 * B_pad * N_pad * D_pad + 2 * B_pad * N_pad * C_pad,
        transcendentals=B_pad * N_pad,
        bytes_accessed=(item * B_pad * D_pad            # x
                        + 4 * B_pad                     # ||x||^2
                        + 4 * B_pad * C_pad             # out
                        + n_btiles * (item * N_pad * D_pad   # train_x^T (re-streamed
                                      + item * N_pad * C_pad  #  once per batch tile)
                                      + 4 * N_pad)),          # ||t||^2
    )

    # VMEM footprint estimate: double-buffered streamed tiles + accumulator +
    # dist/w/cross temporaries; 2x headroom, clamped to a range that is safe
    # on v5e (128 MiB physical) / v6e (128 MiB) / v7x (64 MiB per core).
    est = (2 * item * (B_tile * D_pad + D_pad * N_tile + N_tile * C_pad)
           + 2 * 4 * (N_tile + B_tile)
           + 3 * 4 * B_tile * C_pad
           + 3 * 4 * B_tile * N_tile)
    vmem_limit = int(min(max(2 * est, 32 * 1024 * 1024), 64 * 1024 * 1024))

    out_pad = pl.pallas_call(
        kernel,
        out_shape=jax.ShapeDtypeStruct((B_pad, C_pad), f32),
        grid_spec=pltpu.PrefetchScalarGridSpec(
            num_scalar_prefetch=0,
            grid=grid,
            in_specs=[
                pl.BlockSpec((B_tile, D_pad), lambda i, j: (i, 0)),   # x
                pl.BlockSpec((B_tile, 1),     lambda i, j: (i, 0)),   # ||x||^2
                pl.BlockSpec((D_pad, N_tile), lambda i, j: (0, j)),   # train_x^T
                pl.BlockSpec((N_tile, C_pad), lambda i, j: (j, 0)),   # train_y(+ones)
                pl.BlockSpec((1, N_tile),     lambda i, j: (0, j)),   # ||t||^2
            ],
            out_specs=pl.BlockSpec((B_tile, C_pad), lambda i, j: (i, 0)),
            scratch_shapes=[
                pltpu.VMEM((B_tile, C_pad), jnp.float32),  # acc (incl. denom col)
            ],
        ),
        compiler_params=pltpu.CompilerParams(
            dimension_semantics=("parallel", "arbitrary"),
            vmem_limit_bytes=vmem_limit,
        ),
        cost_estimate=cost,
    )(x_p, x_sq, txt, ty, t_sq)

    return out_pad[:B, :C]


def pnn_forward(x, train_x, train_y, sigma, *, mxu_dtype=jnp.bfloat16,
                b_tile=256, n_tile=512):
    """Convenience wrapper: prepare the static state and apply once."""
    params = pnn_prepare(train_x, train_y, sigma, mxu_dtype=mxu_dtype,
                         n_tile=n_tile)
    return pnn_apply(params, x, b_tile=b_tile)


def pnn_reference(x, train_x, train_y, sigma):
    # Pure-JAX reference matching the PyTorch module exactly.
    diff = x[:, None, :] - train_x[None, :, :]
    distances = jnp.sum(diff * diff, axis=2)
    weights = jnp.exp(-distances / (2.0 * sigma * sigma))
    normalized = weights / (jnp.sum(weights, axis=1, keepdims=True) + 1e-10)
    return normalized @ train_y


if __name__ == "__main__":
    key = jax.random.PRNGKey(0)
    k_x, k_tx, k_ty = jax.random.split(key, 3)

    batch = 8
    n_samples = 32
    input_dim = 16
    out_dim = 4
    sigma = 10.0  # module-level sigma in the original script

    # Deterministic synthetic "trained" state (train_model just stores arrays).
    x = jax.random.normal(k_x, (batch, input_dim), dtype=jnp.float32)
    train_x = jax.random.normal(k_tx, (n_samples, input_dim), dtype=jnp.float32)
    train_y = jax.random.normal(k_ty, (n_samples, out_dim), dtype=jnp.float32)

    ref = pnn_reference(x, train_x, train_y, sigma)

    # Static preprocessing done once per trained model (hoisted off the
    # per-call path), then applied.
    params_bf16 = pnn_prepare(train_x, train_y, sigma)                        # fast path
    params_f32 = pnn_prepare(train_x, train_y, sigma, mxu_dtype=jnp.float32)  # exact path

    out_bf16 = jax.block_until_ready(pnn_apply(params_bf16, x))
    out_f32 = jax.block_until_ready(pnn_apply(params_f32, x))

    assert out_bf16.shape == (batch, out_dim)
    assert out_f32.shape == (batch, out_dim)

    err_f32 = float(jnp.max(jnp.abs(out_f32 - ref)))
    err_bf16 = float(jnp.max(jnp.abs(out_bf16 - ref)))
    assert jnp.allclose(out_f32, ref, atol=1e-4, rtol=1e-4), err_f32
    assert jnp.allclose(out_bf16, ref, atol=2e-2, rtol=2e-2), err_bf16

    print("KERNEL_OK")
</pallas_src>

<mosaic_0001>
module attributes {stable_mosaic.version = 11 : i64} {
  func.func @pnn_kernel(%arg0: i32, %arg1: i32, %arg2: memref<8x128xbf16, #tpu.memory_space<vmem>>, %arg3: memref<8x1xf32, #tpu.memory_space<vmem>>, %arg4: memref<128x128xbf16, #tpu.memory_space<vmem>>, %arg5: memref<128x128xbf16, #tpu.memory_space<vmem>>, %arg6: memref<1x128xf32, #tpu.memory_space<vmem>>, %arg7: memref<8x128xf32, #tpu.memory_space<vmem>>, %arg8: memref<8x128xf32, #tpu.memory_space<vmem>>) attributes {dimension_semantics = [#tpu.dimension_semantics<parallel>, #tpu.dimension_semantics<arbitrary>], iteration_bounds = array<i64: 1, 1>, scalar_prefetch = 0 : i64, scratch_operands = 1 : i64, tpu.core_type = #tpu.core_type<tc>, window_params = [{transform_indices = @transform_0, window_bounds = array<i64: 8, 128>}, {transform_indices = @transform_1, window_bounds = array<i64: 8, 1>}, {transform_indices = @transform_2, window_bounds = array<i64: 128, 128>}, {transform_indices = @transform_3, window_bounds = array<i64: 128, 128>}, {transform_indices = @transform_4, window_bounds = array<i64: 1, 128>}, {transform_indices = @transform_5, window_bounds = array<i64: 8, 128>}]} {
    %c0_i32 = arith.constant 0 : i32
    %0 = arith.cmpi eq, %arg1, %c0_i32 : i32
    %1 = arith.extui %0 : i1 to i32
    %c0_i32_0 = arith.constant 0 : i32
    %2 = arith.cmpi ne, %1, %c0_i32_0 : i32
    scf.if %2 {
      %cst_19 = arith.constant 0.000000e+00 : f32
      %26 = vector.broadcast %cst_19 : f32 to vector<8x128xf32>
      %c0_20 = arith.constant 0 : index
      %c0_21 = arith.constant 0 : index
      %27 = vector.load %arg8[%c0_20, %c0_21] : memref<8x128xf32, #tpu.memory_space<vmem>>, vector<8x128xf32>
      tpu.vector_store %arg8[%c0_20, %c0_21], %26 {strides = array<i32>} : memref<8x128xf32, #tpu.memory_space<vmem>>, vector<8x128xf32>,
    } else {
    }
    %c0 = arith.constant 0 : index
    %c0_1 = arith.constant 0 : index
    %3 = vector.load %arg2[%c0, %c0_1] : memref<8x128xbf16, #tpu.memory_space<vmem>>, vector<8x128xbf16>
    %c0_2 = arith.constant 0 : index
    %c0_3 = arith.constant 0 : index
    %4 = vector.load %arg4[%c0_2, %c0_3] : memref<128x128xbf16, #tpu.memory_space<vmem>>, vector<128x128xbf16>
    %cst = arith.constant dense<0.000000e+00> : vector<8x128xf32>
    %5 = tpu.matmul %3, %4, %cst {dimension_numbers = #tpu.dot_dimension_numbers<[1], [0], [0], [1], [0, 0, 1, 1], [], []>} : vector<8x128xbf16>, vector<128x128xbf16>, vector<8x128xf32> -> vector<8x128xf32>
    %c0_4 = arith.constant 0 : index
    %c0_5 = arith.constant 0 : index
    %6 = vector.load %arg3[%c0_4, %c0_5] : memref<8x1xf32, #tpu.memory_space<vmem>>, vector<8x1xf32>
    %c0_6 = arith.constant 0 : index
    %c0_7 = arith.constant 0 : index
    %7 = vector.load %arg6[%c0_6, %c0_7] : memref<1x128xf32, #tpu.memory_space<vmem>>, vector<1x128xf32>
    %8 = vector.broadcast %6 : vector<8x1xf32> to vector<8x128xf32>
    %9 = vector.broadcast %7 : vector<1x128xf32> to vector<8x128xf32>
    %10 = arith.addf %8, %9 : vector<8x128xf32>
    %cst_8 = arith.constant 2.000000e+00 : f32
    %11 = vector.broadcast %cst_8 : f32 to vector<8x128xf32>
    %12 = arith.mulf %11, %5 : vector<8x128xf32>
    %13 = arith.subf %10, %12 : vector<8x128xf32>
    %cst_9 = arith.constant -5.000000e-03 : f32
    %14 = vector.broadcast %cst_9 : f32 to vector<8x128xf32>
    %15 = arith.mulf %13, %14 : vector<8x128xf32>
    %16 = arith.truncf %15 : vector<8x128xf32> to vector<8x128xbf16>
    %17 = math.exp %16 : vector<8x128xbf16>
    %c0_10 = arith.constant 0 : index
    %c0_11 = arith.constant 0 : index
    %18 = vector.load %arg8[%c0_10, %c0_11] : memref<8x128xf32, #tpu.memory_space<vmem>>, vector<8x128xf32>
    %c0_12 = arith.constant 0 : index
    %c0_13 = arith.constant 0 : index
    %19 = vector.load %arg5[%c0_12, %c0_13] : memref<128x128xbf16, #tpu.memory_space<vmem>>, vector<128x128xbf16>
    %cst_14 = arith.constant dense<0.000000e+00> : vector<8x128xf32>
    %20 = tpu.matmul %17, %19, %cst_14 {dimension_numbers = #tpu.dot_dimension_numbers<[1], [0], [0], [1], [0, 0, 1, 1], [], []>} : vector<8x128xbf16>, vector<128x128xbf16>, vector<8x128xf32> -> vector<8x128xf32>
    %21 = arith.addf %18, %20 : vector<8x128xf32>
    %c0_15 = arith.constant 0 : index
    %c0_16 = arith.constant 0 : index
    %22 = vector.load %arg8[%c0_15, %c0_16] : memref<8x128xf32, #tpu.memory_space<vmem>>, vector<8x128xf32>
    tpu.vector_store %arg8[%c0_15, %c0_16], %21 {strides = array<i32>} : memref<8x128xf32, #tpu.memory_space<vmem>>, vector<8x128xf32>,
    %c0_i32_17 = arith.constant 0 : i32
    %23 = arith.cmpi eq, %arg1, %c0_i32_17 : i32
    %24 = arith.extui %23 : i1 to i32
    %c0_i32_18 = arith.constant 0 : i32
    %25 = arith.cmpi ne, %24, %c0_i32_18 : i32
    scf.if %25 {
      %c0_19 = arith.constant 0 : index
      %c0_20 = arith.constant 0 : index
      %26 = vector.load %arg8[%c0_19, %c0_20] : memref<8x128xf32, #tpu.memory_space<vmem>>, vector<8x128xf32>
      %27 = tpu.iota {dimensions = array<i32: 1>} : vector<8x128xi32>
      %c4_i32 = arith.constant 4 : i32
      %28 = vector.broadcast %c4_i32 : i32 to vector<8x128xi32>
      %29 = arith.cmpi eq, %27, %28 : vector<8x128xi32>
      %cst_21 = arith.constant 0.000000e+00 : f32
      %30 = vector.broadcast %cst_21 : f32 to vector<8x128xf32>
      %31 = arith.select %29, %26, %30 : vector<8x128xi1>, vector<8x128xf32>
      %cst_22 = arith.constant dense<0.000000e+00> : vector<8xf32>
      %32 = vector.multi_reduction <add>, %31, %cst_22 [1] : vector<8x128xf32> to vector<8xf32>
      %33 = vector.shape_cast %32 : vector<8xf32> to vector<8x1xf32>
      %cst_23 = arith.constant 1.000000e-10 : f32
      %34 = vector.broadcast %cst_23 : f32 to vector<8x1xf32>
      %35 = arith.addf %33, %34 : vector<8x1xf32>
      %36 = vector.broadcast %35 : vector<8x1xf32> to vector<8x128xf32>
      %37 = arith.divf %26, %36 : vector<8x128xf32>
      %c0_24 = arith.constant 0 : index
      %c0_25 = arith.constant 0 : index
      %38 = vector.load %arg7[%c0_24, %c0_25] : memref<8x128xf32, #tpu.memory_space<vmem>>, vector<8x128xf32>
      tpu.vector_store %arg7[%c0_24, %c0_25], %37 {strides = array<i32>} : memref<8x128xf32, #tpu.memory_space<vmem>>, vector<8x128xf32>,
    } else {
    }
    return
  }
  func.func @transform_0(%arg0: i32, %arg1: i32) -> (i32, i32) {
    %c0_i32 = arith.constant 0 : i32
    %c0_i32_0 = arith.constant 0 : i32
    return %arg0, %c0_i32 : i32, i32
  }
  func.func @transform_1(%arg0: i32, %arg1: i32) -> (i32, i32) {
    %c0_i32 = arith.constant 0 : i32
    %c0_i32_0 = arith.constant 0 : i32
    return %arg0, %c0_i32 : i32, i32
  }
  func.func @transform_2(%arg0: i32, %arg1: i32) -> (i32, i32) {
    %c0_i32 = arith.constant 0 : i32
    %c0_i32_0 = arith.constant 0 : i32
    return %c0_i32, %arg1 : i32, i32
  }
  func.func @transform_3(%arg0: i32, %arg1: i32) -> (i32, i32) {
    %c0_i32 = arith.constant 0 : i32
    %c0_i32_0 = arith.constant 0 : i32
    return %arg1, %c0_i32 : i32, i32
  }
  func.func @transform_4(%arg0: i32, %arg1: i32) -> (i32, i32) {
    %c0_i32 = arith.constant 0 : i32
    %c0_i32_0 = arith.constant 0 : i32
    return %c0_i32, %arg1 : i32, i32
  }
  func.func @transform_5(%arg0: i32, %arg1: i32) -> (i32, i32) {
    %c0_i32 = arith.constant 0 : i32
    %c0_i32_0 = arith.constant 0 : i32
    return %arg0, %c0_i32 : i32, i32
  }
}

</mosaic_0001>

<llo_original>
// kernel: tpu_custom_call.1
$region0: #{tpu_custom_call.1}
  #allocation0 [shape = 'u32[]', space=smem, size = 0x4, offset = 0x4, fixed_abs, tag = 'smem constant byte address 0x4 - core index']
  #allocation1 [shape = 'u32[144,128]{1,0:T(1,128)}', space=vmem, size = 0x12000, scoped, tag = 'internal scratch']
  #allocation2 [shape = 'f32[8,128]{1,0:T(8,128)}', space=vmem, size = 0x1000, scoped, tag = 'scratch operand']
  %s0 = inlined_call_operand.vmem [shape: bf16[8,128], index: 0, kind: input, shape index: {}]
  %s1 = inlined_call_operand.vmem [shape: f32[8,1], index: 1, kind: input, shape index: {}]
  %s2 = inlined_call_operand.hbm [shape: bf16[128,128], index: 2, kind: input, shape index: {}]
  %s3 = inlined_call_operand.hbm [shape: bf16[128,128], index: 3, kind: input, shape index: {}]
  %s4 = inlined_call_operand.vmem [shape: f32[1,128], index: 4, kind: input, shape index: {}]
  %s5 = inlined_call_operand.hbm [shape: f32[8,128], index: 5, kind: output, shape index: {}]
  %s6 = sld [smem:[#allocation0]]
  $region46: #{tpu_custom_call.1} parent=0
    _
  %s8 = ssub.s32 1, %s6
  %s9 = scalar_select 0, %s8, %s6
  $region1: #{tpu_custom_call.1} parent=0
    #allocation3 [shape = 'u8[32768]{0}', space=vmem, size = 0x8000, scoped, tag = 'input window, operand 2, single buffered']
    #allocation4 [shape = 's32[1]{0}', space=sflag, size = 0x4, scoped, tag = 'scoped memory for tpu_custom_call.1']
    #allocation5 [shape = 's32[1]{0}', space=sflag, size = 0x4, scoped, tag = 'scoped memory for tpu_custom_call.1']
    #allocation6 [shape = 'u8[32768]{0}', space=vmem, size = 0x8000, scoped, tag = 'input window, operand 3, single buffered']
    #allocation7 [shape = 's32[1]{0}', space=sflag, size = 0x4, scoped, tag = 'scoped memory for tpu_custom_call.1']
    #allocation8 [shape = 'u8[4096]{0}', space=vmem, size = 0x1000, scoped, tag = 'output window, operand 0, single buffered']
    %10 = vsyncpa [#allocation4], 0
    %11 = vsyncpa [#allocation7], 0
    %12 = vsyncpa [#allocation5], 0
    // Predicated region
    $region2: #{tpu_custom_call.1} parent=1 // pred_check
      _
    $region3: #{tpu_custom_call.1} parent=1 // pred_check_branch
      %14 = sbr.rel (0) target = $region5
    $region4: #{tpu_custom_call.1} parent=1 // pred_region
      _
    $region5: #{tpu_custom_call.1} parent=1 // pred_fallthru
      _
    // Predicated region
    $region6: #{tpu_custom_call.1} parent=1 // pred_check
      _
    $region7: #{tpu_custom_call.1} parent=1 // pred_check_branch
      %16 = sbr.rel (0) target = $region9
    $region8: #{tpu_custom_call.1} parent=1 // pred_region
      _
    $region9: #{tpu_custom_call.1} parent=1 // pred_fallthru
      _
    // Predicated region
    $region10: #{tpu_custom_call.1} parent=1 // pred_check
      _
    $region11: #{tpu_custom_call.1} parent=1 // pred_check_branch
      %18 = sbr.rel (0) target = $region13
    $region12: #{tpu_custom_call.1} parent=1 // pred_region
      %s20 = ssub.s32 1024, 1024
      %21 = vsyncadd [#allocation4], %s20
      %s22 = sshll.u32 [#allocation3], 4
      %s23 = int_to_ptr.vmem [resolvable:$true] %s22
      %28 = dma.hbm_to_vmem [thread:$0]  %s2, 1024, %s23, [#allocation4], 64, 64, 4
    $region13: #{tpu_custom_call.1} parent=1 // pred_fallthru
      _
    // Predicated region
    $region14: #{tpu_custom_call.1} parent=1 // pred_check
      _
    $region15: #{tpu_custom_call.1} parent=1 // pred_check_branch
      %30 = sbr.rel (0) target = $region17
    $region16: #{tpu_custom_call.1} parent=1 // pred_region
      %s32 = ssub.s32 1024, 1024
      %33 = vsyncadd [#allocation7], %s32
      %s34 = sshll.u32 [#allocation6], 4
      %s35 = int_to_ptr.vmem [resolvable:$true] %s34
      %40 = dma.hbm_to_vmem [thread:$0]  %s3, 1024, %s35, [#allocation7], 64, 64, 4
    $region17: #{tpu_custom_call.1} parent=1 // pred_fallthru
      _
    // Predicated region
    $region18: #{tpu_custom_call.1} parent=1 // pred_check
      _
    $region19: #{tpu_custom_call.1} parent=1 // pred_check_branch
      %42 = sbr.rel (0) target = $region21
    $region20: #{tpu_custom_call.1} parent=1 // pred_region
      _
    $region21: #{tpu_custom_call.1} parent=1 // pred_fallthru
      _
    // Predicated region
    $region22: #{tpu_custom_call.1} parent=1 // pred_check
      _
    $region23: #{tpu_custom_call.1} parent=1 // pred_check_branch
      %44 = sbr.rel (0) target = $region25
    $region24: #{tpu_custom_call.1} parent=1 // pred_region
      %45 = dma.done [#allocation4], 1024
    $region25: #{tpu_custom_call.1} parent=1 // pred_fallthru
      _
    // Predicated region
    $region26: #{tpu_custom_call.1} parent=1 // pred_check
      _
    $region27: #{tpu_custom_call.1} parent=1 // pred_check_branch
      %47 = sbr.rel (0) target = $region29
    $region28: #{tpu_custom_call.1} parent=1 // pred_region
      %48 = dma.done [#allocation7], 1024
    $region29: #{tpu_custom_call.1} parent=1 // pred_fallthru
      _
    %p50 = scmp.eq.s32.totalorder 0, 0
    // Predicated region
    $region30: #{tpu_custom_call.1} parent=1 // pred_check
      %p51 = pneg %p50
    $region31: #{tpu_custom_call.1} parent=1 // pred_check_branch
      %53 = sbr.rel (%p51) target = $region33
    $region32: #{tpu_custom_call.1} parent=1 // pred_region
      %54 = vst [vmem:[#allocation2] sm:$0xff] 0.0
    $region33: #{tpu_custom_call.1} parent=1 // pred_fallthru
      _
    %v55 = vld [vmem:[%s0] sm:$0xf]
    %v56 = vld [vmem:[#allocation3] sm:$0xf]
    %v57 = vld [vmem:[#allocation3 + $0x4] sm:$0xf]
    %v58 = vld [vmem:[#allocation3 + $0x8] sm:$0xf]
    %v59 = vld [vmem:[#allocation3 + $0xc] sm:$0xf]
    %v60 = vld [vmem:[#allocation3 + $0x10] sm:$0xf]
    %v61 = vld [vmem:[#allocation3 + $0x14] sm:$0xf]
    %v62 = vld [vmem:[#allocation3 + $0x18] sm:$0xf]
    %v63 = vld [vmem:[#allocation3 + $0x1c] sm:$0xf]
    %v64 = vld [vmem:[#allocation3 + $0x20] sm:$0xf]
    %v65 = vld [vmem:[#allocation3 + $0x24] sm:$0xf]
    %v66 = vld [vmem:[#allocation3 + $0x28] sm:$0xf]
    %v67 = vld [vmem:[#allocation3 + $0x2c] sm:$0xf]
    %v68 = vld [vmem:[#allocation3 + $0x30] sm:$0xf]
    %v69 = vld [vmem:[#allocation3 + $0x34] sm:$0xf]
    %v70 = vld [vmem:[#allocation3 + $0x38] sm:$0xf]
    %v71 = vld [vmem:[#allocation3 + $0x3c] sm:$0xf]
    %v88 = vunpack.c.l.b16 %v56
    %v89 = vunpack.c.l.b16 %v57
    %v90 = vunpack.c.l.b16 %v58
    %v91 = vunpack.c.l.b16 %v59
    %v92 = vunpack.c.l.b16 %v60
    %v93 = vunpack.c.l.b16 %v61
    %v94 = vunpack.c.l.b16 %v62
    %v95 = vunpack.c.l.b16 %v63
    %v96 = vunpack.c.l.b16 %v64
    %v97 = vunpack.c.l.b16 %v65
    %v98 = vunpack.c.l.b16 %v66
    %v99 = vunpack.c.l.b16 %v67
    %v100 = vunpack.c.l.b16 %v68
    %v101 = vunpack.c.l.b16 %v69
    %v102 = vunpack.c.l.b16 %v70
    %v103 = vunpack.c.l.b16 %v71
    %v104 = vpack.c.b16 %v89, %v88
    %v105 = vpack.c.b16 %v91, %v90
    %v106 = vpack.c.b16 %v93, %v92
    %v107 = vpack.c.b16 %v95, %v94
    %v108 = vpack.c.b16 %v97, %v96
    %v109 = vpack.c.b16 %v99, %v98
    %v110 = vpack.c.b16 %v101, %v100
    %v111 = vpack.c.b16 %v103, %v102
    %120 = vmatprep.subr.bf16.mxu0 0
    %121 = vmatpush1.bf16.msra.mxu0 %v111
    %122 = vmatprep.subr.bf16.mxu0 0
    %123 = vmatpush1.bf16.msra.mxu0 %v110
    %124 = vmatprep.subr.bf16.mxu0 0
    %125 = vmatpush1.bf16.msra.mxu0 %v109
    %126 = vmatprep.subr.bf16.mxu0 0
    %127 = vmatpush1.bf16.msra.mxu0 %v108
    %128 = vmatprep.subr.bf16.mxu0 0
    %129 = vmatpush1.bf16.msra.mxu0 %v107
    %130 = vmatprep.subr.bf16.mxu0 0
    %131 = vmatpush1.bf16.msra.mxu0 %v106
    %132 = vmatprep.subr.bf16.mxu0 0
    %133 = vmatpush1.bf16.msra.mxu0 %v105
    %134 = vmatprep.subr.bf16.mxu0 0
    %135 = vmatpush1.bf16.msra.mxu0 %v104
    %136 = vmatprep.subr.bf16.mxu0 0
    %137 = vmatpush2.bf16.msra.mxu0 0
    %138 = vmatprep.subr.bf16.mxu0 0
    %139 = vmatpush2.bf16.msra.mxu0 0
    %140 = vmatprep.subr.bf16.mxu0 0
    %141 = vmatpush2.bf16.msra.mxu0 0
    %142 = vmatprep.subr.bf16.mxu0 0
    %143 = vmatpush2.bf16.msra.mxu0 0
    %144 = vmatprep.subr.bf16.mxu0 0
    %145 = vmatpush2.bf16.msra.mxu0 0
    %146 = vmatprep.subr.bf16.mxu0 0
    %147 = vmatpush2.bf16.msra.mxu0 0
    %148 = vmatprep.subr.bf16.mxu0 0
    %149 = vmatpush2.bf16.msra.mxu0 0
    %150 = vmatprep.subr.bf16.mxu0 0
    %151 = vmatpush2.bf16.msra.mxu0 0
    %152 = vmatprep.mubr.bf16.mxu0 0
    %153 = vmatmul.mubr.bf16.gmra.mxu0 %v55
    %v154 = vpop.f32.mrf.mxu0
    %v155 = vadd.f32 0.0, %v154
    %v156 = vpop.f32.mrf.mxu0
    %v157 = vpop.f32.mrf.mxu0
    %v158 = vpop.f32.mrf.mxu0
    %159 = vdwg.mxu0
    %v160 = vld [vmem:[%s1] sm:$0xff]
    %v161 = vld [vmem:[%s4] sm:$0x1]
    %163 = vset.pattern.permute.xlu0 0
    %164 = vperm.xlu0 %163, %v160
    %v165 = vpop.permute.xlu0 %164
    %v168 = vlaneseq
    %v169 = vshrl.u32 %v168, 7
    %v170 = vsub.s32 0, %v169
    %v171 = vrot.slane %v161, %v170
    %v173 = vadd.f32 %v165, %v171
    %v174 = vmul.f32 %v155, 2.0
    %v175 = vsub.f32 %v173, %v174
    %v176 = vmul.f32 %v175, -0.005
    %v177 = vpack.c.bf16 %v176, %v176
    %v179 = vmul.bf16 %v177, 1069105081
    %v180 = vpow.bf16.pop %v179
    %v181 = vld [vmem:[#allocation2] sm:$0xff]
    %v182 = vld [vmem:[#allocation6] sm:$0xf]
    %v183 = vld [vmem:[#allocation6 + $0x4] sm:$0xf]
    %v184 = vld [vmem:[#allocation6 + $0x8] sm:$0xf]
    %v185 = vld [vmem:[#allocation6 + $0xc] sm:$0xf]
    %v186 = vld [vmem:[#allocation6 + $0x10] sm:$0xf]
    %v187 = vld [vmem:[#allocation6 + $0x14] sm:$0xf]
    %v188 = vld [vmem:[#allocation6 + $0x18] sm:$0xf]
    %v189 = vld [vmem:[#allocation6 + $0x1c] sm:$0xf]
    %v190 = vld [vmem:[#allocation6 + $0x20] sm:$0xf]
    %v191 = vld [vmem:[#allocation6 + $0x24] sm:$0xf]
    %v192 = vld [vmem:[#allocation6 + $0x28] sm:$0xf]
    %v193 = vld [vmem:[#allocation6 + $0x2c] sm:$0xf]
    %v194 = vld [vmem:[#allocation6 + $0x30] sm:$0xf]
    %v195 = vld [vmem:[#allocation6 + $0x34] sm:$0xf]
    %v196 = vld [vmem:[#allocation6 + $0x38] sm:$0xf]
    %v197 = vld [vmem:[#allocation6 + $0x3c] sm:$0xf]
    %v214 = vunpack.c.l.b16 %v182
    %v215 = vunpack.c.l.b16 %v183
    %v216 = vunpack.c.l.b16 %v184
    %v217 = vunpack.c.l.b16 %v185
    %v218 = vunpack.c.l.b16 %v186
    %v219 = vunpack.c.l.b16 %v187
    %v220 = vunpack.c.l.b16 %v188
    %v221 = vunpack.c.l.b16 %v189
    %v222 = vunpack.c.l.b16 %v190
    %v223 = vunpack.c.l.b16 %v191
    %v224 = vunpack.c.l.b16 %v192
    %v225 = vunpack.c.l.b16 %v193
    %v226 = vunpack.c.l.b16 %v194
    %v227 = vunpack.c.l.b16 %v195
    %v228 = vunpack.c.l.b16 %v196
    %v229 = vunpack.c.l.b16 %v197
    %v230 = vpack.c.b16 %v215, %v214
    %v231 = vpack.c.b16 %v217, %v216
    %v232 = vpack.c.b16 %v219, %v218
    %v233 = vpack.c.b16 %v221, %v220
    %v234 = vpack.c.b16 %v223, %v222
    %v235 = vpack.c.b16 %v225, %v224
    %v236 = vpack.c.b16 %v227, %v226
    %v237 = vpack.c.b16 %v229, %v228
    %246 = vmatprep.subr.bf16.mxu0 0
    %247 = vmatpush1.bf16.msra.mxu0 %v237
    %248 = vmatprep.subr.bf16.mxu0 0
    %249 = vmatpush1.bf16.msra.mxu0 %v236
    %250 = vmatprep.subr.bf16.mxu0 0
    %251 = vmatpush1.bf16.msra.mxu0 %v235
    %252 = vmatprep.subr.bf16.mxu0 0
    %253 = vmatpush1.bf16.msra.mxu0 %v234
    %254 = vmatprep.subr.bf16.mxu0 0
    %255 = vmatpush1.bf16.msra.mxu0 %v233
    %256 = vmatprep.subr.bf16.mxu0 0
    %257 = vmatpush1.bf16.msra.mxu0 %v232
    %258 = vmatprep.subr.bf16.mxu0 0
    %259 = vmatpush1.bf16.msra.mxu0 %v231
    %260 = vmatprep.subr.bf16.mxu0 0
    %261 = vmatpush1.bf16.msra.mxu0 %v230
    %262 = vmatprep.subr.bf16.mxu0 0
    %263 = vmatpush2.bf16.msra.mxu0 0
    %264 = vmatprep.subr.bf16.mxu0 0
    %265 = vmatpush2.bf16.msra.mxu0 0
    %266 = vmatprep.subr.bf16.mxu0 0
    %267 = vmatpush2.bf16.msra.mxu0 0
    %268 = vmatprep.subr.bf16.mxu0 0
    %269 = vmatpush2.bf16.msra.mxu0 0
    %270 = vmatprep.subr.bf16.mxu0 0
    %271 = vmatpush2.bf16.msra.mxu0 0
    %272 = vmatprep.subr.bf16.mxu0 0
    %273 = vmatpush2.bf16.msra.mxu0 0
    %274 = vmatprep.subr.bf16.mxu0 0
    %275 = vmatpush2.bf16.msra.mxu0 0
    %276 = vmatprep.subr.bf16.mxu0 0
    %277 = vmatpush2.bf16.msra.mxu0 0
    %278 = vmatprep.mubr.bf16.mxu0 0
    %279 = vmatmul.mubr.bf16.gmra.mxu0 %v180
    %v280 = vpop.f32.mrf.mxu0
    %v281 = vadd.f32 0.0, %v280
    %v282 = vpop.f32.mrf.mxu0
    %v283 = vpop.f32.mrf.mxu0
    %v284 = vpop.f32.mrf.mxu0
    %285 = vdwg.mxu0
    %v286 = vadd.f32 %v181, %v281
    %287 = vst [vmem:[#allocation2] sm:$0xff] %v286
    // Predicated region
    $region34: #{tpu_custom_call.1} parent=1 // pred_check
      %p288 = pneg %p50
    $region35: #{tpu_custom_call.1} parent=1 // pred_check_branch
      %290 = sbr.rel (%p288) target = $region37
    $region36: #{tpu_custom_call.1} parent=1 // pred_region
      %v291 = vld [vmem:[#allocation2] sm:$0xff]
      %v292 = vlaneseq
      %v293 = vand.u32 %v292, 127
      %vm294 = vcmp.eq.s32.totalorder %v293, 4
      %v295 = vsel %vm294, %v291, 0.0
      %296 = vadd.xlane.f32.xlu0 %v295
      %v297 = vpop.xlane.xlu0 %296
      %v298 = vadd.f32 %v297, 1e-10
      %v299 = vrcp.pop %v298
      %v300 = vmul.f32 %v291, %v299
      %301 = vst [vmem:[#allocation8] sm:$0xff] %v300
    $region37: #{tpu_custom_call.1} parent=1 // pred_fallthru
      _
    // Predicated region
    $region38: #{tpu_custom_call.1} parent=1 // pred_check
      _
    $region39: #{tpu_custom_call.1} parent=1 // pred_check_branch
      %303 = sbr.rel (0) target = $region41
    $region40: #{tpu_custom_call.1} parent=1 // pred_region
      %s305 = ssub.s32 128, 128
      %306 = vsyncadd [#allocation5], %s305
      %s308 = sshll.u32 [#allocation8], 4
      %s309 = int_to_ptr.vmem [resolvable:$true] %s308
      %311 = dma.vmem_to_hbm [thread:$0]  %s309, 128, %s5, [#allocation5]
    $region41: #{tpu_custom_call.1} parent=1 // pred_fallthru
      _
    // Predicated region
    $region42: #{tpu_custom_call.1} parent=1 // pred_check
      _
    $region43: #{tpu_custom_call.1} parent=1 // pred_check_branch
      %313 = sbr.rel (0) target = $region45
    $region44: #{tpu_custom_call.1} parent=1 // pred_region
      %314 = dma.done [#allocation5], 128
    $region45: #{tpu_custom_call.1} parent=1 // pred_fallthru
      _
    %315 = vsyncpa [#allocation4], 1
    %316 = vsyncpa [#allocation7], 1
    %317 = vsyncpa [#allocation5], 1

</llo_original>
